<compile_context>
chip_gen: v6e
topology: v6e:2x2x1
jax: 0.10.0
libtpu: 0.0.40
codegen_flags: <defaults>
</compile_context>

<pallas_src>
import functools

import jax
import jax.numpy as jnp
from jax.experimental import pallas as pl
from jax.experimental.pallas import tpu as pltpu

EPS = 1e-6          # instance_norm_layer epsilon (module passes 1e-6 explicitly)
NEG_SLOPE = 0.01    # F.leaky_relu default negative_slope


def _leaky_relu(v):
    return jnp.where(v >= 0, v, NEG_SLOPE * v)


def residual1d_block_kernel(t_ref, x_ref, w1_ref, b1_ref, w2_ref, b2_ref,
                            out_ref, *, pad, mm_dtype):
    NB, L, C = x_ref.shape
    K = w1_ref.shape[0]
    F2 = w1_ref.shape[2]
    F = F2 // 2
    Fh = w2_ref.shape[2]
    M = NB * L

    # Position-within-element (0..L-1) for every row of the folded M axis,
    # precomputed in the wrapper (tiny), used only for boundary masks.
    t_idx = t_ref[...]                               # (M, 1) int32

    x3 = x_ref[...].astype(jnp.float32)              # (NB, L, C) for the residual
    x2 = x3.reshape(M, C).astype(mm_dtype)           # folded MXU LHS for conv1

    b1 = b1_ref[...].astype(jnp.float32)             # (1, 2F)
    b2 = b2_ref[...].astype(jnp.float32)             # (1, Fh)

    def conv_same(lhs2d, w_ref, b_row):
        # 'same' 1-D conv over the folded (NB*L) M axis: one full-M, aligned
        # matmul per tap; the tap offset is an XLU sublane roll of the LHS and
        # the per-element 'same' zero padding is a (M, 1) validity mask.
        # Roll wrap-around / cross-element rows are exactly the masked rows.
        acc = None
        for k in range(K):
            d = k - pad
            if d == 0:
                xk = lhs2d
            else:
                xk = pltpu.roll(lhs2d, shift=(-d) % M, axis=0)
                if d < 0:
                    valid = t_idx >= -d              # first |d| rows of each element invalid
                else:
                    valid = t_idx < (L - d)          # last d rows of each element invalid
                xk = jnp.where(valid, xk, jnp.zeros((), xk.dtype))
            term = jnp.dot(xk, w_ref[k], preferred_element_type=jnp.float32)
            acc = term if acc is None else acc + term
        return acc + b_row                           # bias broadcast once per conv

    def inorm(h3):
        # Centered-once instance norm over length, per (element, channel);
        # biased variance, affine weight=1 / bias=0 (matches the module).
        mean = jnp.mean(h3, axis=1, keepdims=True)
        cen = h3 - mean
        var = jnp.mean(cen * cen, axis=1, keepdims=True)
        return cen * jax.lax.rsqrt(var + EPS)

    # Stage 1: fused conv1 / conv1_gates -> leaky_relu -> instance_norm ->
    # leaky_relu -> GLU.  The fused 2F norm is per-channel over L, so it is
    # identical to normalising the two branches separately.
    hg = _leaky_relu(conv_same(x2, w1_ref, b1))      # (M, 2F) f32
    hgn = _leaky_relu(inorm(hg.reshape(NB, L, F2)))  # (NB, L, 2F)
    h1_glu = hgn[:, :, :F] * jax.nn.sigmoid(hgn[:, :, F:])   # (NB, L, F)

    # Stage 2: conv2 -> leaky_relu -> instance_norm -> leaky_relu, residual add.
    h1_2d = h1_glu.reshape(M, F).astype(mm_dtype)
    h2 = _leaky_relu(conv_same(h1_2d, w2_ref, b2))   # (M, Fh) f32
    h2n = _leaky_relu(inorm(h2.reshape(NB, L, Fh)))  # (NB, L, Fh)

    out_ref[...] = (x3 + h2n).astype(out_ref.dtype)


def _vmem_capacity_bytes():
    try:
        return int(pltpu.get_tpu_info().vmem_capacity_bytes)
    except Exception:
        return 64 * 1024 * 1024   # conservative fallback = v7x per-TensorCore VMEM


def _pick_nb(B, L, C, F, K, in_itemsize, mm_itemsize, vmem_cap):
    """Batch-block size: fill a generous slice of the *per-generation* VMEM,
    accounting for double-buffered in/out blocks, resident (double-buffered)
    weights, the lane-padded position input, and live f32 intermediates, while
    keeping >= 4 grid steps when the batch allows (megacore + DMA pipelining)."""
    Fh = C
    weight_bytes = 2 * K * (C * 2 * F + F * Fh) * mm_itemsize
    per_elem = (
        2 * L * C * (in_itemsize + in_itemsize)      # in + out blocks, double-buffered
        + 2 * L * 512                                # lane-padded (M, 1) position input
        + 6 * L * (2 * F) * 4                        # live f32 intermediates (generous)
    )
    budget = max(vmem_cap // 3 - weight_bytes, 2 * 1024 * 1024)
    nb_mem = max(1, budget // max(per_elem, 1))
    nb_split = max(1, B // 4)                        # >= 4 grid steps when possible
    return int(max(1, min(B, nb_mem, nb_split)))


def residual1d_block(x, params, *, matmul_dtype=jnp.bfloat16):
    """x: (B, C, L) (PyTorch NCL).  params = (w1, b1, w1g, b1g, w2, b2) with
    conv weights stored as (K, Cin, Cout) and biases as (1, Cout).
    Returns (B, C, L).  MXU operands (and weight storage) use `matmul_dtype`
    (bf16 by default for v5e/v6e/v7x peak MXU throughput); accumulation and
    all norm / activation math stay f32.  Pass matmul_dtype=jnp.float32 for
    bit-faithful f32 module semantics."""
    w1, b1, w1g, b1g, w2, b2 = params
    B, C, L = x.shape
    K, Cin, F = w1.shape
    Fh = w2.shape[2]
    assert Cin == C and Fh == C, "residual add requires in_channels == filters // 2"
    assert K % 2 == 1, "only odd kernel_size (symmetric 'same' padding) supported"
    pad = (K - 1) // 2

    # Fuse conv1 / conv1_gates into a single (K, Cin, 2F) weight (one matmul
    # pass, doubled lane fill).  Pre-cast weights to the MXU dtype here so the
    # kernel does no per-tap casts.  With F % 128 == 0 (default filters=1024)
    # the GLU split at column F lands on a 128-lane boundary.
    w1f = jnp.concatenate([w1, w1g], axis=2).astype(matmul_dtype)   # (K, Cin, 2F)
    b1f = jnp.concatenate([b1, b1g], axis=1).astype(jnp.float32)    # (1, 2F)
    w2m = w2.astype(matmul_dtype)                                   # (K, F, Fh)
    b2f = b2.astype(jnp.float32)                                    # (1, Fh)

    # NCL -> NLC: length on sublanes, channels on lanes.
    # TODO(synk): accept/return NLC (or transpose in-kernel) to drop these two
    # wrapper-side HBM passes.
    x_lc = jnp.transpose(x, (0, 2, 1))                              # (B, L, C)

    vmem_cap = _vmem_capacity_bytes()
    NB = _pick_nb(B, L, C, F, K, x.dtype.itemsize,
                  jnp.dtype(matmul_dtype).itemsize, vmem_cap)
    Bp = ((B + NB - 1) // NB) * NB
    if Bp != B:
        x_lc = jnp.pad(x_lc, ((0, Bp - B), (0, 0), (0, 0)))

    M = NB * L
    # Position within element for every folded-M row (used for boundary masks).
    t_idx = (jax.lax.broadcasted_iota(jnp.int32, (M, 1), 0) % L).astype(jnp.int32)

    kernel = functools.partial(residual1d_block_kernel, pad=pad,
                               mm_dtype=matmul_dtype)

    out = pl.pallas_call(
        kernel,
        out_shape=jax.ShapeDtypeStruct((Bp, L, C), x.dtype),
        grid_spec=pltpu.PrefetchScalarGridSpec(
            num_scalar_prefetch=0,
            grid=(Bp // NB,),
            in_specs=[
                pl.BlockSpec((M, 1), lambda b: (0, 0)),              # within-element position
                pl.BlockSpec((NB, L, C), lambda b: (b, 0, 0)),       # input block
                pl.BlockSpec((K, Cin, 2 * F), lambda b: (0, 0, 0)),  # fused conv1 weight
                pl.BlockSpec((1, 2 * F), lambda b: (0, 0)),          # fused conv1 bias
                pl.BlockSpec((K, F, Fh), lambda b: (0, 0, 0)),       # conv2 weight
                pl.BlockSpec((1, Fh), lambda b: (0, 0)),             # conv2 bias
            ],
            out_specs=pl.BlockSpec((NB, L, C), lambda b: (b, 0, 0)),
        ),
        compiler_params=pltpu.CompilerParams(
            # Disjoint output blocks per step -> batch-block axis is parallel
            # (v7x megacore splits it across its two TensorCores).
            dimension_semantics=("parallel",),
            vmem_limit_bytes=(vmem_cap * 3) // 4,
        ),
    )(t_idx, x_lc, w1f, b1f, w2m, b2f)

    if Bp != B:
        out = out[:B]
    return jnp.transpose(out, (0, 2, 1))                             # back to NCL


def _reference(x, params):
    """Pure-JAX reference of the PyTorch forward (for verification)."""
    w1, b1, w1g, b1g, w2, b2 = params

    def conv1d_same(x_ncl, w_kio, b):
        w_oik = jnp.transpose(w_kio, (2, 1, 0))  # (Cout, Cin, K)
        y = jax.lax.conv_general_dilated(
            x_ncl, w_oik, window_strides=(1,), padding='SAME',
            dimension_numbers=('NCH', 'OIH', 'NCH'))
        return y + b.reshape(1, -1, 1)

    def lrelu(v):
        return jnp.where(v >= 0, v, NEG_SLOPE * v)

    def inorm(v):
        m = jnp.mean(v, axis=2, keepdims=True)
        var = jnp.mean((v - m) ** 2, axis=2, keepdims=True)
        return (v - m) * jax.lax.rsqrt(var + EPS)

    h1 = lrelu(conv1d_same(x, w1, b1[0]))
    h1n = lrelu(inorm(h1))
    g1 = lrelu(conv1d_same(x, w1g, b1g[0]))
    g1n = lrelu(inorm(g1))
    h1_glu = h1n * jax.nn.sigmoid(g1n)
    h2 = lrelu(conv1d_same(h1_glu, w2, b2[0]))
    h2n = lrelu(inorm(h2))
    return x + h2n


if __name__ == "__main__":
    # Small shapes consistent with the module: in_channels = filters // 2
    B, C_IN, L = 2, 4, 16
    FILTERS, KSIZE = 8, 3

    key = jax.random.PRNGKey(0)
    k_x, k1, kb1, k1g, kb1g, k2, kb2 = jax.random.split(key, 7)

    x = jax.random.normal(k_x, (B, C_IN, L), dtype=jnp.float32)

    # Deterministic synthetic parameters.  Conv weights stored as (K, Cin, Cout);
    # biases as (1, Cout) so all kernel operands are >= 2-D.
    w1 = 0.2 * jax.random.normal(k1, (KSIZE, C_IN, FILTERS), dtype=jnp.float32)
    b1 = 0.1 * jax.random.normal(kb1, (1, FILTERS), dtype=jnp.float32)
    w1g = 0.2 * jax.random.normal(k1g, (KSIZE, C_IN, FILTERS), dtype=jnp.float32)
    b1g = 0.1 * jax.random.normal(kb1g, (1, FILTERS), dtype=jnp.float32)
    w2 = 0.2 * jax.random.normal(k2, (KSIZE, FILTERS, FILTERS // 2), dtype=jnp.float32)
    b2 = 0.1 * jax.random.normal(kb2, (1, FILTERS // 2), dtype=jnp.float32)
    params = (w1, b1, w1g, b1g, w2, b2)

    ref = jax.block_until_ready(_reference(x, params))

    # Exact-semantics path (f32 MXU operands): must match the f32 reference tightly.
    out_f32 = jax.block_until_ready(
        residual1d_block(x, params, matmul_dtype=jnp.float32))
    assert out_f32.shape == (B, C_IN, L)
    assert jnp.allclose(out_f32, ref, rtol=1e-4, atol=1e-4), "f32 path mismatch vs reference"

    # Default fast path (bf16 MXU operands, f32 accumulation / norm math).
    out_bf16 = jax.block_until_ready(residual1d_block(x, params))
    assert out_bf16.shape == (B, C_IN, L)
    assert bool(jnp.all(jnp.isfinite(out_bf16)))
    assert jnp.allclose(out_bf16, ref, rtol=5e-2, atol=5e-2), "bf16 path mismatch vs reference"

    print("KERNEL_OK")
</pallas_src>

<mosaic_0001>
module attributes {stable_mosaic.version = 11 : i64} {
  func.func @residual1d_block_kernel(%arg0: i32, %arg1: memref<16x1xi32, #tpu.memory_space<vmem>>, %arg2: memref<1x16x4xf32, #tpu.memory_space<vmem>>, %arg3: memref<3x4x16xf32, #tpu.memory_space<vmem>>, %arg4: memref<1x16xf32, #tpu.memory_space<vmem>>, %arg5: memref<3x8x4xf32, #tpu.memory_space<vmem>>, %arg6: memref<1x4xf32, #tpu.memory_space<vmem>>, %arg7: memref<1x16x4xf32, #tpu.memory_space<vmem>>) attributes {dimension_semantics = [#tpu.dimension_semantics<parallel>], iteration_bounds = array<i64: 2>, scalar_prefetch = 0 : i64, scratch_operands = 0 : i64, tpu.core_type = #tpu.core_type<tc>, window_params = [{pipeline_mode = #tpu.pipeline_mode<synchronous>, transform_indices = @transform_0, window_bounds = array<i64: 16, 1>}, {transform_indices = @transform_1, window_bounds = array<i64: 1, 16, 4>}, {pipeline_mode = #tpu.pipeline_mode<synchronous>, transform_indices = @transform_2, window_bounds = array<i64: 3, 4, 16>}, {pipeline_mode = #tpu.pipeline_mode<synchronous>, transform_indices = @transform_3, window_bounds = array<i64: 1, 16>}, {pipeline_mode = #tpu.pipeline_mode<synchronous>, transform_indices = @transform_4, window_bounds = array<i64: 3, 8, 4>}, {pipeline_mode = #tpu.pipeline_mode<synchronous>, transform_indices = @transform_5, window_bounds = array<i64: 1, 4>}, {transform_indices = @transform_6, window_bounds = array<i64: 1, 16, 4>}]} {
    %c0 = arith.constant 0 : index
    %c0_0 = arith.constant 0 : index
    %0 = vector.load %arg1[%c0, %c0_0] : memref<16x1xi32, #tpu.memory_space<vmem>>, vector<16x1xi32>
    %c0_1 = arith.constant 0 : index
    %c0_2 = arith.constant 0 : index
    %c0_3 = arith.constant 0 : index
    %1 = vector.load %arg2[%c0_1, %c0_2, %c0_3] : memref<1x16x4xf32, #tpu.memory_space<vmem>>, vector<1x16x4xf32>
    %2 = vector.shape_cast %1 : vector<1x16x4xf32> to vector<16x4xf32>
    %c0_4 = arith.constant 0 : index
    %c0_5 = arith.constant 0 : index
    %3 = vector.load %arg4[%c0_4, %c0_5] : memref<1x16xf32, #tpu.memory_space<vmem>>, vector<1x16xf32>
    %c0_6 = arith.constant 0 : index
    %c0_7 = arith.constant 0 : index
    %4 = vector.load %arg6[%c0_6, %c0_7] : memref<1x4xf32, #tpu.memory_space<vmem>>, vector<1x4xf32>
    %c1_i32 = arith.constant 1 : i32
    %5 = tpu.dynamic_rotate %2 by %c1_i32 dim 0 : vector<16x4xf32>, i32 -> vector<16x4xf32>
    %c1_i32_8 = arith.constant 1 : i32
    %6 = vector.broadcast %c1_i32_8 : i32 to vector<16x1xi32>
    %7 = arith.cmpi sge, %0, %6 : vector<16x1xi32>
    %cst = arith.constant 0.000000e+00 : f32
    %8 = vector.shape_cast %7 : vector<16x1xi1> to vector<16x1xi1>
    %9 = vector.broadcast %8 : vector<16x1xi1> to vector<16x4xi1>
    %10 = vector.broadcast %cst : f32 to vector<16x4xf32>
    %11 = arith.select %9, %5, %10 : vector<16x4xi1>, vector<16x4xf32>
    %c0_9 = arith.constant 0 : index
    %c0_10 = arith.constant 0 : index
    %c0_11 = arith.constant 0 : index
    %12 = vector.load %arg3[%c0_9, %c0_10, %c0_11] : memref<3x4x16xf32, #tpu.memory_space<vmem>>, vector<1x4x16xf32>
    %13 = vector.shape_cast %12 : vector<1x4x16xf32> to vector<4x16xf32>
    %cst_12 = arith.constant dense<0.000000e+00> : vector<16x16xf32>
    %14 = tpu.matmul %11, %13, %cst_12 {dimension_numbers = #tpu.dot_dimension_numbers<[1], [0], [0], [1], [0, 0, 1, 1], [], []>} : vector<16x4xf32>, vector<4x16xf32>, vector<16x16xf32> -> vector<16x16xf32>
    %c1 = arith.constant 1 : index
    %c0_13 = arith.constant 0 : index
    %c0_14 = arith.constant 0 : index
    %15 = vector.load %arg3[%c1, %c0_13, %c0_14] : memref<3x4x16xf32, #tpu.memory_space<vmem>>, vector<1x4x16xf32>
    %16 = vector.shape_cast %15 : vector<1x4x16xf32> to vector<4x16xf32>
    %cst_15 = arith.constant dense<0.000000e+00> : vector<16x16xf32>
    %17 = tpu.matmul %2, %16, %cst_15 {dimension_numbers = #tpu.dot_dimension_numbers<[1], [0], [0], [1], [0, 0, 1, 1], [], []>} : vector<16x4xf32>, vector<4x16xf32>, vector<16x16xf32> -> vector<16x16xf32>
    %18 = arith.addf %14, %17 : vector<16x16xf32>
    %c15_i32 = arith.constant 15 : i32
    %19 = tpu.dynamic_rotate %2 by %c15_i32 dim 0 : vector<16x4xf32>, i32 -> vector<16x4xf32>
    %c15_i32_16 = arith.constant 15 : i32
    %20 = vector.broadcast %c15_i32_16 : i32 to vector<16x1xi32>
    %21 = arith.cmpi slt, %0, %20 : vector<16x1xi32>
    %cst_17 = arith.constant 0.000000e+00 : f32
    %22 = vector.shape_cast %21 : vector<16x1xi1> to vector<16x1xi1>
    %23 = vector.broadcast %22 : vector<16x1xi1> to vector<16x4xi1>
    %24 = vector.broadcast %cst_17 : f32 to vector<16x4xf32>
    %25 = arith.select %23, %19, %24 : vector<16x4xi1>, vector<16x4xf32>
    %c2 = arith.constant 2 : index
    %c0_18 = arith.constant 0 : index
    %c0_19 = arith.constant 0 : index
    %26 = vector.load %arg3[%c2, %c0_18, %c0_19] : memref<3x4x16xf32, #tpu.memory_space<vmem>>, vector<1x4x16xf32>
    %27 = vector.shape_cast %26 : vector<1x4x16xf32> to vector<4x16xf32>
    %cst_20 = arith.constant dense<0.000000e+00> : vector<16x16xf32>
    %28 = tpu.matmul %25, %27, %cst_20 {dimension_numbers = #tpu.dot_dimension_numbers<[1], [0], [0], [1], [0, 0, 1, 1], [], []>} : vector<16x4xf32>, vector<4x16xf32>, vector<16x16xf32> -> vector<16x16xf32>
    %29 = arith.addf %18, %28 : vector<16x16xf32>
    %30 = vector.broadcast %3 : vector<1x16xf32> to vector<16x16xf32>
    %31 = arith.addf %29, %30 : vector<16x16xf32>
    %cst_21 = arith.constant 0.000000e+00 : f32
    %32 = vector.broadcast %cst_21 : f32 to vector<16x16xf32>
    %33 = arith.cmpf oge, %31, %32 : vector<16x16xf32>
    %cst_22 = arith.constant 0.00999999977 : f32
    %34 = vector.broadcast %cst_22 : f32 to vector<16x16xf32>
    %35 = arith.mulf %34, %31 : vector<16x16xf32>
    %36 = arith.select %33, %31, %35 : vector<16x16xi1>, vector<16x16xf32>
    %37 = vector.shape_cast %36 : vector<16x16xf32> to vector<1x16x16xf32>
    %cst_23 = arith.constant dense<0.000000e+00> : vector<1x16xf32>
    %38 = vector.multi_reduction <add>, %37, %cst_23 [1] : vector<1x16x16xf32> to vector<1x16xf32>
    %39 = vector.shape_cast %38 : vector<1x16xf32> to vector<1x1x16xf32>
    %cst_24 = arith.constant 1.600000e+01 : f32
    %40 = vector.broadcast %cst_24 : f32 to vector<1x1x16xf32>
    %41 = arith.divf %39, %40 : vector<1x1x16xf32>
    %42 = vector.broadcast %41 : vector<1x1x16xf32> to vector<1x16x16xf32>
    %43 = arith.subf %37, %42 : vector<1x16x16xf32>
    %44 = arith.mulf %43, %43 : vector<1x16x16xf32>
    %cst_25 = arith.constant dense<0.000000e+00> : vector<1x16xf32>
    %45 = vector.multi_reduction <add>, %44, %cst_25 [1] : vector<1x16x16xf32> to vector<1x16xf32>
    %46 = vector.shape_cast %45 : vector<1x16xf32> to vector<1x1x16xf32>
    %cst_26 = arith.constant 1.600000e+01 : f32
    %47 = vector.broadcast %cst_26 : f32 to vector<1x1x16xf32>
    %48 = arith.divf %46, %47 : vector<1x1x16xf32>
    %cst_27 = arith.constant 9.99999997E-7 : f32
    %49 = vector.broadcast %cst_27 : f32 to vector<1x1x16xf32>
    %50 = arith.addf %48, %49 : vector<1x1x16xf32>
    %51 = math.rsqrt %50 : vector<1x1x16xf32>
    %52 = vector.broadcast %51 : vector<1x1x16xf32> to vector<1x16x16xf32>
    %53 = arith.mulf %43, %52 : vector<1x16x16xf32>
    %cst_28 = arith.constant 0.000000e+00 : f32
    %54 = vector.broadcast %cst_28 : f32 to vector<1x16x16xf32>
    %55 = arith.cmpf oge, %53, %54 : vector<1x16x16xf32>
    %cst_29 = arith.constant 0.00999999977 : f32
    %56 = vector.broadcast %cst_29 : f32 to vector<1x16x16xf32>
    %57 = arith.mulf %56, %53 : vector<1x16x16xf32>
    %58 = arith.select %55, %53, %57 : vector<1x16x16xi1>, vector<1x16x16xf32>
    %59 = vector.extract_strided_slice %58 {offsets = [0, 0, 0], sizes = [1, 16, 8], strides = [1, 1, 1]} : vector<1x16x16xf32> to vector<1x16x8xf32>
    %60 = vector.extract_strided_slice %58 {offsets = [0, 0, 8], sizes = [1, 16, 8], strides = [1, 1, 1]} : vector<1x16x16xf32> to vector<1x16x8xf32>
    %61 = arith.negf %60 : vector<1x16x8xf32>
    %62 = math.exp %61 : vector<1x16x8xf32>
    %cst_30 = arith.constant 1.000000e+00 : f32
    %63 = vector.broadcast %cst_30 : f32 to vector<1x16x8xf32>
    %64 = arith.addf %63, %62 : vector<1x16x8xf32>
    %65 = arith.divf %63, %64 : vector<1x16x8xf32>
    %66 = arith.mulf %59, %65 : vector<1x16x8xf32>
    %67 = vector.shape_cast %66 : vector<1x16x8xf32> to vector<16x8xf32>
    %c1_i32_31 = arith.constant 1 : i32
    %68 = tpu.dynamic_rotate %67 by %c1_i32_31 dim 0 : vector<16x8xf32>, i32 -> vector<16x8xf32>
    %c1_i32_32 = arith.constant 1 : i32
    %69 = vector.broadcast %c1_i32_32 : i32 to vector<16x1xi32>
    %70 = arith.cmpi sge, %0, %69 : vector<16x1xi32>
    %cst_33 = arith.constant 0.000000e+00 : f32
    %71 = vector.shape_cast %70 : vector<16x1xi1> to vector<16x1xi1>
    %72 = vector.broadcast %71 : vector<16x1xi1> to vector<16x8xi1>
    %73 = vector.broadcast %cst_33 : f32 to vector<16x8xf32>
    %74 = arith.select %72, %68, %73 : vector<16x8xi1>, vector<16x8xf32>
    %c0_34 = arith.constant 0 : index
    %c0_35 = arith.constant 0 : index
    %c0_36 = arith.constant 0 : index
    %75 = vector.load %arg5[%c0_34, %c0_35, %c0_36] : memref<3x8x4xf32, #tpu.memory_space<vmem>>, vector<1x8x4xf32>
    %76 = vector.shape_cast %75 : vector<1x8x4xf32> to vector<8x4xf32>
    %cst_37 = arith.constant dense<0.000000e+00> : vector<16x4xf32>
    %77 = tpu.matmul %74, %76, %cst_37 {dimension_numbers = #tpu.dot_dimension_numbers<[1], [0], [0], [1], [0, 0, 1, 1], [], []>} : vector<16x8xf32>, vector<8x4xf32>, vector<16x4xf32> -> vector<16x4xf32>
    %c1_38 = arith.constant 1 : index
    %c0_39 = arith.constant 0 : index
    %c0_40 = arith.constant 0 : index
    %78 = vector.load %arg5[%c1_38, %c0_39, %c0_40] : memref<3x8x4xf32, #tpu.memory_space<vmem>>, vector<1x8x4xf32>
    %79 = vector.shape_cast %78 : vector<1x8x4xf32> to vector<8x4xf32>
    %cst_41 = arith.constant dense<0.000000e+00> : vector<16x4xf32>
    %80 = tpu.matmul %67, %79, %cst_41 {dimension_numbers = #tpu.dot_dimension_numbers<[1], [0], [0], [1], [0, 0, 1, 1], [], []>} : vector<16x8xf32>, vector<8x4xf32>, vector<16x4xf32> -> vector<16x4xf32>
    %81 = arith.addf %77, %80 : vector<16x4xf32>
    %c15_i32_42 = arith.constant 15 : i32
    %82 = tpu.dynamic_rotate %67 by %c15_i32_42 dim 0 : vector<16x8xf32>, i32 -> vector<16x8xf32>
    %c15_i32_43 = arith.constant 15 : i32
    %83 = vector.broadcast %c15_i32_43 : i32 to vector<16x1xi32>
    %84 = arith.cmpi slt, %0, %83 : vector<16x1xi32>
    %cst_44 = arith.constant 0.000000e+00 : f32
    %85 = vector.shape_cast %84 : vector<16x1xi1> to vector<16x1xi1>
    %86 = vector.broadcast %85 : vector<16x1xi1> to vector<16x8xi1>
    %87 = vector.broadcast %cst_44 : f32 to vector<16x8xf32>
    %88 = arith.select %86, %82, %87 : vector<16x8xi1>, vector<16x8xf32>
    %c2_45 = arith.constant 2 : index
    %c0_46 = arith.constant 0 : index
    %c0_47 = arith.constant 0 : index
    %89 = vector.load %arg5[%c2_45, %c0_46, %c0_47] : memref<3x8x4xf32, #tpu.memory_space<vmem>>, vector<1x8x4xf32>
    %90 = vector.shape_cast %89 : vector<1x8x4xf32> to vector<8x4xf32>
    %cst_48 = arith.constant dense<0.000000e+00> : vector<16x4xf32>
    %91 = tpu.matmul %88, %90, %cst_48 {dimension_numbers = #tpu.dot_dimension_numbers<[1], [0], [0], [1], [0, 0, 1, 1], [], []>} : vector<16x8xf32>, vector<8x4xf32>, vector<16x4xf32> -> vector<16x4xf32>
    %92 = arith.addf %81, %91 : vector<16x4xf32>
    %93 = vector.broadcast %4 : vector<1x4xf32> to vector<16x4xf32>
    %94 = arith.addf %92, %93 : vector<16x4xf32>
    %cst_49 = arith.constant 0.000000e+00 : f32
    %95 = vector.broadcast %cst_49 : f32 to vector<16x4xf32>
    %96 = arith.cmpf oge, %94, %95 : vector<16x4xf32>
    %cst_50 = arith.constant 0.00999999977 : f32
    %97 = vector.broadcast %cst_50 : f32 to vector<16x4xf32>
    %98 = arith.mulf %97, %94 : vector<16x4xf32>
    %99 = arith.select %96, %94, %98 : vector<16x4xi1>, vector<16x4xf32>
    %100 = vector.shape_cast %99 : vector<16x4xf32> to vector<1x16x4xf32>
    %cst_51 = arith.constant dense<0.000000e+00> : vector<1x4xf32>
    %101 = vector.multi_reduction <add>, %100, %cst_51 [1] : vector<1x16x4xf32> to vector<1x4xf32>
    %102 = vector.shape_cast %101 : vector<1x4xf32> to vector<1x1x4xf32>
    %cst_52 = arith.constant 1.600000e+01 : f32
    %103 = vector.broadcast %cst_52 : f32 to vector<1x1x4xf32>
    %104 = arith.divf %102, %103 : vector<1x1x4xf32>
    %105 = vector.broadcast %104 : vector<1x1x4xf32> to vector<1x16x4xf32>
    %106 = arith.subf %100, %105 : vector<1x16x4xf32>
    %107 = arith.mulf %106, %106 : vector<1x16x4xf32>
    %cst_53 = arith.constant dense<0.000000e+00> : vector<1x4xf32>
    %108 = vector.multi_reduction <add>, %107, %cst_53 [1] : vector<1x16x4xf32> to vector<1x4xf32>
    %109 = vector.shape_cast %108 : vector<1x4xf32> to vector<1x1x4xf32>
    %cst_54 = arith.constant 1.600000e+01 : f32
    %110 = vector.broadcast %cst_54 : f32 to vector<1x1x4xf32>
    %111 = arith.divf %109, %110 : vector<1x1x4xf32>
    %cst_55 = arith.constant 9.99999997E-7 : f32
    %112 = vector.broadcast %cst_55 : f32 to vector<1x1x4xf32>
    %113 = arith.addf %111, %112 : vector<1x1x4xf32>
    %114 = math.rsqrt %113 : vector<1x1x4xf32>
    %115 = vector.broadcast %114 : vector<1x1x4xf32> to vector<1x16x4xf32>
    %116 = arith.mulf %106, %115 : vector<1x16x4xf32>
    %cst_56 = arith.constant 0.000000e+00 : f32
    %117 = vector.broadcast %cst_56 : f32 to vector<1x16x4xf32>
    %118 = arith.cmpf oge, %116, %117 : vector<1x16x4xf32>
    %cst_57 = arith.constant 0.00999999977 : f32
    %119 = vector.broadcast %cst_57 : f32 to vector<1x16x4xf32>
    %120 = arith.mulf %119, %116 : vector<1x16x4xf32>
    %121 = arith.select %118, %116, %120 : vector<1x16x4xi1>, vector<1x16x4xf32>
    %122 = arith.addf %1, %121 : vector<1x16x4xf32>
    %c0_58 = arith.constant 0 : index
    %c0_59 = arith.constant 0 : index
    %c0_60 = arith.constant 0 : index
    %123 = vector.load %arg7[%c0_58, %c0_59, %c0_60] : memref<1x16x4xf32, #tpu.memory_space<vmem>>, vector<1x16x4xf32>
    tpu.vector_store %arg7[%c0_58, %c0_59, %c0_60], %122 {strides = array<i32>} : memref<1x16x4xf32, #tpu.memory_space<vmem>>, vector<1x16x4xf32>,
    return
  }
  func.func @transform_0(%arg0: i32) -> (i32, i32) {
    %c0_i32 = arith.constant 0 : i32
    %c0_i32_0 = arith.constant 0 : i32
    %c0_i32_1 = arith.constant 0 : i32
    return %c0_i32, %c0_i32_0 : i32, i32
  }
  func.func @transform_1(%arg0: i32) -> (i32, i32, i32) {
    %c0_i32 = arith.constant 0 : i32
    %c0_i32_0 = arith.constant 0 : i32
    %c0_i32_1 = arith.constant 0 : i32
    return %arg0, %c0_i32, %c0_i32_0 : i32, i32, i32
  }
  func.func @transform_2(%arg0: i32) -> (i32, i32, i32) {
    %c0_i32 = arith.constant 0 : i32
    %c0_i32_0 = arith.constant 0 : i32
    %c0_i32_1 = arith.constant 0 : i32
    %c0_i32_2 = arith.constant 0 : i32
    return %c0_i32, %c0_i32_0, %c0_i32_1 : i32, i32, i32
  }
  func.func @transform_3(%arg0: i32) -> (i32, i32) {
    %c0_i32 = arith.constant 0 : i32
    %c0_i32_0 = arith.constant 0 : i32
    %c0_i32_1 = arith.constant 0 : i32
    return %c0_i32, %c0_i32_0 : i32, i32
  }
  func.func @transform_4(%arg0: i32) -> (i32, i32, i32) {
    %c0_i32 = arith.constant 0 : i32
    %c0_i32_0 = arith.constant 0 : i32
    %c0_i32_1 = arith.constant 0 : i32
    %c0_i32_2 = arith.constant 0 : i32
    return %c0_i32, %c0_i32_0, %c0_i32_1 : i32, i32, i32
  }
  func.func @transform_5(%arg0: i32) -> (i32, i32) {
    %c0_i32 = arith.constant 0 : i32
    %c0_i32_0 = arith.constant 0 : i32
    %c0_i32_1 = arith.constant 0 : i32
    return %c0_i32, %c0_i32_0 : i32, i32
  }
  func.func @transform_6(%arg0: i32) -> (i32, i32, i32) {
    %c0_i32 = arith.constant 0 : i32
    %c0_i32_0 = arith.constant 0 : i32
    %c0_i32_1 = arith.constant 0 : i32
    return %arg0, %c0_i32, %c0_i32_0 : i32, i32, i32
  }
}

</mosaic_0001>

<llo_original>
// kernel: tpu_custom_call.1
$region0: #{tpu_custom_call.1}
  #allocation0 [shape = 'u32[]', space=smem, size = 0x4, offset = 0x4, fixed_abs, tag = 'smem constant byte address 0x4 - core index']
  #allocation1 [shape = 'u32[144,128]{1,0:T(1,128)}', space=vmem, size = 0x12000, scoped, tag = 'internal scratch']
  %s0 = inlined_call_operand.vmem [shape: s32[16,1], index: 0, kind: input, shape index: {}]
  %s1 = inlined_call_operand.vmem [shape: f32[2,16,4], index: 1, kind: input, shape index: {}]
  %s2 = inlined_call_operand.vmem [shape: f32[3,4,16], index: 2, kind: input, shape index: {}]
  %s3 = inlined_call_operand.vmem [shape: f32[1,16], index: 3, kind: input, shape index: {}]
  %s4 = inlined_call_operand.vmem [shape: f32[3,8,4], index: 4, kind: input, shape index: {}]
  %s5 = inlined_call_operand.vmem [shape: f32[1,4], index: 5, kind: input, shape index: {}]
  %s6 = inlined_call_operand.vmem [shape: f32[2,16,4], index: 6, kind: output, shape index: {}]
  %s7 = sld [smem:[#allocation0]]
  $region57: #{tpu_custom_call.1} parent=0
    _
  %s9 = ssub.s32 1, %s7
  %s10 = scalar_select 0, %s9, %s7
  loop: start=0, step=1, limit=4
  $region2: #{tpu_custom_call.1} parent=0 // loop_pre_header
    _
  $region3: #{tpu_custom_call.1} parent=0 // loop_header
    %s12 = sphi 0, %s16
    %p13 = scmp.ge.s32.totalorder %s12, 4
    %s20 = sphi 0, %s20
    %s22 = sphi 0, %s20
    %s23 = sphi 0, %s22
    %s37 = sphi 0, %s23
    %s43 = sphi 0, %s45
    %s46 = sphi 0, %s43
    %s47 = sphi 0, %s46
    %s63 = sphi 0, %s47
    %s67 = sphi 0, %s67
    %s69 = sphi 0, %s67
    %s70 = sphi 0, %s69
    %s84 = sphi 0, %s70
    %s88 = sphi 0, %s88
    %s90 = sphi 0, %s88
    %s91 = sphi 0, %s90
    %s105 = sphi 0, %s91
    %s109 = sphi 0, %s109
    %s111 = sphi 0, %s109
    %s112 = sphi 0, %s111
    %s126 = sphi 0, %s112
    %s130 = sphi 0, %s130
    %s132 = sphi 0, %s130
    %s133 = sphi 0, %s132
    %s147 = sphi 0, %s133
    %s153 = sphi 0, %s155
    %s156 = sphi 0, %s153
    %s157 = sphi 0, %s156
    %s173 = sphi 0, %s157
  $region4: #{tpu_custom_call.1} parent=0 // loop_header_branch
    %15 = sbr.rel (%p13) target = $region8
  $region5: #{tpu_custom_call.1} parent=0 // loop_body
    %s17 = ssub.s32 %s12, 1
    %s18 = ssub.s32 %s12, 2
    %s19 = sadd.s32 %s12, 1
    %s21 = sadd.s32 %s20, 1
    %p24 = scmp.eq.s32.totalorder %s12, 1
    %p25 = scmp.ne.s32.totalorder %s20, %s22
    %p26 = scmp.eq.s32.totalorder %s12, 0
    %p27 = por %p25, %p26
    %p28 = scmp.ne.s32.totalorder %s20, %s22
    %p29 = scmp.eq.s32.totalorder %s17, 1
    %p30 = por %p28, %p29
    %p31 = scmp.ne.s32.totalorder %s22, %s23
    %p32 = scmp.eq.s32.totalorder %s17, 0
    %p33 = por %p31, %p32
    %p34 = scmp.ne.s32.totalorder %s22, %s23
    %p35 = scmp.eq.s32.totalorder %s18, 1
    %p36 = por %p34, %p35
    %p38 = scmp.ne.s32.totalorder %s23, %s37
    %p39 = scmp.eq.s32.totalorder %s18, 0
    %p40 = por %p38, %p39
    %s41 = ssub.s32 %s12, %s19
    %p42 = scmp.eq.s32.totalorder %s41, 0
    %s44 = sadd.s32 %s43, 1
    %s45 = scalar_select %p42, %s43, %s44
    %p48 = pneg %p42
    %p49 = scmp.eq.s32.totalorder %s12, 1
    %p50 = por %p48, %p49
    %p51 = scmp.ne.s32.totalorder %s43, %s46
    %p52 = scmp.eq.s32.totalorder %s12, 0
    %p53 = por %p51, %p52
    %p54 = scmp.ne.s32.totalorder %s43, %s46
    %p55 = scmp.eq.s32.totalorder %s17, 1
    %p56 = por %p54, %p55
    %p57 = scmp.ne.s32.totalorder %s46, %s47
    %p58 = scmp.eq.s32.totalorder %s17, 0
    %p59 = por %p57, %p58
    %p60 = scmp.ne.s32.totalorder %s46, %s47
    %p61 = scmp.eq.s32.totalorder %s18, 1
    %p62 = por %p60, %p61
    %p64 = scmp.ne.s32.totalorder %s47, %s63
    %p65 = scmp.eq.s32.totalorder %s18, 0
    %p66 = por %p64, %p65
    %s68 = sadd.s32 %s67, 1
    %p71 = scmp.eq.s32.totalorder %s12, 1
    %p72 = scmp.ne.s32.totalorder %s67, %s69
    %p73 = scmp.eq.s32.totalorder %s12, 0
    %p74 = por %p72, %p73
    %p75 = scmp.ne.s32.totalorder %s67, %s69
    %p76 = scmp.eq.s32.totalorder %s17, 1
    %p77 = por %p75, %p76
    %p78 = scmp.ne.s32.totalorder %s69, %s70
    %p79 = scmp.eq.s32.totalorder %s17, 0
    %p80 = por %p78, %p79
    %p81 = scmp.ne.s32.totalorder %s69, %s70
    %p82 = scmp.eq.s32.totalorder %s18, 1
    %p83 = por %p81, %p82
    %p85 = scmp.ne.s32.totalorder %s70, %s84
    %p86 = scmp.eq.s32.totalorder %s18, 0
    %p87 = por %p85, %p86
    %s89 = sadd.s32 %s88, 1
    %p92 = scmp.eq.s32.totalorder %s12, 1
    %p93 = scmp.ne.s32.totalorder %s88, %s90
    %p94 = scmp.eq.s32.totalorder %s12, 0
    %p95 = por %p93, %p94
    %p96 = scmp.ne.s32.totalorder %s88, %s90
    %p97 = scmp.eq.s32.totalorder %s17, 1
    %p98 = por %p96, %p97
    %p99 = scmp.ne.s32.totalorder %s90, %s91
    %p100 = scmp.eq.s32.totalorder %s17, 0
    %p101 = por %p99, %p100
    %p102 = scmp.ne.s32.totalorder %s90, %s91
    %p103 = scmp.eq.s32.totalorder %s18, 1
    %p104 = por %p102, %p103
    %p106 = scmp.ne.s32.totalorder %s91, %s105
    %p107 = scmp.eq.s32.totalorder %s18, 0
    %p108 = por %p106, %p107
    %s110 = sadd.s32 %s109, 1
    %p113 = scmp.eq.s32.totalorder %s12, 1
    %p114 = scmp.ne.s32.totalorder %s109, %s111
    %p115 = scmp.eq.s32.totalorder %s12, 0
    %p116 = por %p114, %p115
    %p117 = scmp.ne.s32.totalorder %s109, %s111
    %p118 = scmp.eq.s32.totalorder %s17, 1
    %p119 = por %p117, %p118
    %p120 = scmp.ne.s32.totalorder %s111, %s112
    %p121 = scmp.eq.s32.totalorder %s17, 0
    %p122 = por %p120, %p121
    %p123 = scmp.ne.s32.totalorder %s111, %s112
    %p124 = scmp.eq.s32.totalorder %s18, 1
    %p125 = por %p123, %p124
    %p127 = scmp.ne.s32.totalorder %s112, %s126
    %p128 = scmp.eq.s32.totalorder %s18, 0
    %p129 = por %p127, %p128
    %s131 = sadd.s32 %s130, 1
    %p134 = scmp.eq.s32.totalorder %s12, 1
    %p135 = scmp.ne.s32.totalorder %s130, %s132
    %p136 = scmp.eq.s32.totalorder %s12, 0
    %p137 = por %p135, %p136
    %p138 = scmp.ne.s32.totalorder %s130, %s132
    %p139 = scmp.eq.s32.totalorder %s17, 1
    %p140 = por %p138, %p139
    %p141 = scmp.ne.s32.totalorder %s132, %s133
    %p142 = scmp.eq.s32.totalorder %s17, 0
    %p143 = por %p141, %p142
    %p144 = scmp.ne.s32.totalorder %s132, %s133
    %p145 = scmp.eq.s32.totalorder %s18, 1
    %p146 = por %p144, %p145
    %p148 = scmp.ne.s32.totalorder %s133, %s147
    %p149 = scmp.eq.s32.totalorder %s18, 0
    %p150 = por %p148, %p149
    %s151 = ssub.s32 %s12, %s19
    %p152 = scmp.eq.s32.totalorder %s151, 0
    %s154 = sadd.s32 %s153, 1
    %s155 = scalar_select %p152, %s153, %s154
    %p158 = pneg %p152
    %p159 = scmp.eq.s32.totalorder %s12, 1
    %p160 = por %p158, %p159
    %p161 = scmp.ne.s32.totalorder %s153, %s156
    %p162 = scmp.eq.s32.totalorder %s12, 0
    %p163 = por %p161, %p162
    %p164 = scmp.ne.s32.totalorder %s153, %s156
    %p165 = scmp.eq.s32.totalorder %s17, 1
    %p166 = por %p164, %p165
    %p167 = scmp.ne.s32.totalorder %s156, %s157
    %p168 = scmp.eq.s32.totalorder %s17, 0
    %p169 = por %p167, %p168
    %p170 = scmp.ne.s32.totalorder %s156, %s157
    %p171 = scmp.eq.s32.totalorder %s18, 1
    %p172 = por %p170, %p171
    %p174 = scmp.ne.s32.totalorder %s157, %s173
    %p175 = scmp.eq.s32.totalorder %s18, 0
    %p176 = por %p174, %p175
    %p177 = scmp.le.s32.totalorder 1, %s12
    %p178 = scmp.lt.s32.totalorder %s12, 3
    %p179 = pnand %p177, %p178
    %p180 = pneg %p179
    // Predicated region
    $region9: #{tpu_custom_call.1} parent=5 // pred_check
      _
    $region10: #{tpu_custom_call.1} parent=5 // pred_check_branch
      %182 = sbr.rel (%p179) target = $region12
    $region11: #{tpu_custom_call.1} parent=5 // pred_region
      %s183 = ssub.s32 %s12, 1
      // Predicated region
      $region13: #{tpu_custom_call.1} parent=11 // pred_check
        %p184 = pneg %p33
      $region14: #{tpu_custom_call.1} parent=11 // pred_check_branch
        %186 = sbr.rel (%p184) target = $region16
      $region15: #{tpu_custom_call.1} parent=11 // pred_region
        _
      $region16: #{tpu_custom_call.1} parent=11 // pred_fallthru
        _
      // Predicated region
      $region17: #{tpu_custom_call.1} parent=11 // pred_check
        %p187 = pneg %p80
      $region18: #{tpu_custom_call.1} parent=11 // pred_check_branch
        %189 = sbr.rel (%p187) target = $region20
      $region19: #{tpu_custom_call.1} parent=11 // pred_region
        _
      $region20: #{tpu_custom_call.1} parent=11 // pred_fallthru
        _
      // Predicated region
      $region21: #{tpu_custom_call.1} parent=11 // pred_check
        %p190 = pneg %p101
      $region22: #{tpu_custom_call.1} parent=11 // pred_check_branch
        %192 = sbr.rel (%p190) target = $region24
      $region23: #{tpu_custom_call.1} parent=11 // pred_region
        _
      $region24: #{tpu_custom_call.1} parent=11 // pred_fallthru
        _
      // Predicated region
      $region25: #{tpu_custom_call.1} parent=11 // pred_check
        %p193 = pneg %p122
      $region26: #{tpu_custom_call.1} parent=11 // pred_check_branch
        %195 = sbr.rel (%p193) target = $region28
      $region27: #{tpu_custom_call.1} parent=11 // pred_region
        _
      $region28: #{tpu_custom_call.1} parent=11 // pred_fallthru
        _
      // Predicated region
      $region29: #{tpu_custom_call.1} parent=11 // pred_check
        %p196 = pneg %p143
      $region30: #{tpu_custom_call.1} parent=11 // pred_check_branch
        %198 = sbr.rel (%p196) target = $region32
      $region31: #{tpu_custom_call.1} parent=11 // pred_region
        _
      $region32: #{tpu_custom_call.1} parent=11 // pred_fallthru
        _
    $region12: #{tpu_custom_call.1} parent=5 // pred_fallthru
      _
    %p199 = scmp.lt.s32.totalorder %s12, 2
    // Predicated region
    $region33: #{tpu_custom_call.1} parent=5 // pred_check
      %p200 = pneg %p199
    $region34: #{tpu_custom_call.1} parent=5 // pred_check_branch
      %202 = sbr.rel (%p200) target = $region36
    $region35: #{tpu_custom_call.1} parent=5 // pred_region
      // Predicated region
      $region37: #{tpu_custom_call.1} parent=35 // pred_check
        %p203 = pneg %p53
      $region38: #{tpu_custom_call.1} parent=35 // pred_check_branch
        %205 = sbr.rel (%p203) target = $region40
      $region39: #{tpu_custom_call.1} parent=35 // pred_region
        %p206 = scmp.lt.s32.totalorder %s12, 1
        %s207 = scalar_select %p206, %s12, 1
        %s208 = smul.addr %s207, 2
        %s209 = smul.addr %s208, 8
        %s210 = scalar_lea.vmem %s1, %s209
      $region40: #{tpu_custom_call.1} parent=35 // pred_fallthru
        _
    $region36: #{tpu_custom_call.1} parent=5 // pred_fallthru
      _
    %p211 = scmp.le.s32.totalorder 1, %s12
    %p212 = scmp.lt.s32.totalorder %s12, 3
    %p213 = pnand %p211, %p212
    %p214 = pneg %p213
    // Predicated region
    $region41: #{tpu_custom_call.1} parent=5 // pred_check
      _
    $region42: #{tpu_custom_call.1} parent=5 // pred_check_branch
      %216 = sbr.rel (%p213) target = $region44
    $region43: #{tpu_custom_call.1} parent=5 // pred_region
      %s217 = ssub.s32 %s12, 1
      %p218 = pneg %p33
      %p219 = pneg %p30
      %p220 = scmp.lt.s32.totalorder %s17, 1
      %s221 = scalar_select %p220, %s17, 1
      %s222 = smul.addr %s221, 2
      %s223 = smul.addr %s222, 8
      %s224 = scalar_lea.vmem %s1, %s223
      %p225 = pneg %p59
      %p226 = pneg %p56
      %p227 = pneg %p80
      %p228 = pneg %p77
      %p229 = pneg %p101
      %p230 = pneg %p98
      %p231 = pneg %p122
      %p232 = pneg %p119
      %p233 = pneg %p143
      %p234 = pneg %p140
      %p235 = pneg %p169
      %p236 = pneg %p166
      %p237 = scmp.lt.s32.totalorder %s17, 1
      %s238 = scalar_select %p237, %s17, 1
      %s239 = smul.addr %s238, 2
      %s240 = smul.addr %s239, 8
      %s241 = scalar_lea.vmem %s6, %s240
      %p242 = scmp.lt.s32.totalorder %s17, 1
      %s243 = scalar_select %p242, %s17, 1
      %s244 = smul.addr %s243, 2
      %s245 = smul.addr %s244, 8
      %s246 = scalar_lea.vmem %s1, %s245
      %p247 = scmp.lt.s32.totalorder %s17, 1
      %s248 = scalar_select %p247, %s17, 1
      %s249 = smul.addr %s248, 2
      %s250 = smul.addr %s249, 8
      %s251 = scalar_lea.vmem %s6, %s250
      %v252 = vld [vmem:[%s0] sm:$0xff]
      %v253 = vld [vmem:[%s0 + $0x8] sm:$0xff]
      %v254 = vld [vmem:[%s246] sm:$0xff]
      %v255 = vld [vmem:[%s246 + $0x8] sm:$0xff]
      %v256 = vld [vmem:[%s3] sm:$0x1]
      %v257 = vld [vmem:[%s5] sm:$0x1]
      %v258 = vrot.slane %v254, 7
      %v259 = vrot.slane %v255, 7
      %v260 = vlaneseq
      %v261 = vshrl.u32 %v260, 7
      %vm262 = vcmp.lt.s32.totalorder %v261, 1
      %v263 = vsel %vm262, %v258, %v259
      %v264 = vsel %vm262, %v259, %v258
      %vm265 = vcmp.ge.s32.totalorder %v252, 1
      %vm266 = vcmp.ge.s32.totalorder %v253, 1
      %v267 = vsel %vm265, 1, 0
      %v268 = vsel %vm266, 1, 0
      %269 = vset.pattern.permute.xlu0 0
      %270 = vperm.xlu0 %269, %v267
      %v271 = vpop.permute.xlu0 %270
      %272 = vset.pattern.permute.xlu0 0
      %273 = vperm.xlu0 %272, %v268
      %v274 = vpop.permute.xlu0 %273
      %vm275 = vcmp.eq.s32.totalorder %v271, 1
      %vm276 = vcmp.eq.s32.totalorder %v274, 1
      %v277 = vsel %vm275, %v264, 0.0
      %v278 = vsel %vm276, %v263, 0.0
      %v279 = vld [vmem:[%s2] sm:$0xf]
      %s280 = scalar_lea.vmem %s2, 4
      %v281 = vld [vmem:[%s280] sm:$0xf]
      %vm282 = vcmask 31744
      %v284 = vsel %vm282, %v254, 0
      %v287 = vsel %vm282, %v255, 0
      %vm289 = vcmask 1043456
      %v291 = vsel %vm289, %v281, 0
      %293 = vmatprep.subr.mxu0 0.0
      %294 = vmatpush1.msra.mxu0 0.0
      %295 = vmatprep.subr.mxu0 0.0
      %296 = vmatpush1.msra.mxu0 0.0
      %297 = vmatprep.subr.mxu0 0.0
      %298 = vmatpush1.msra.mxu0 0.0
      %299 = vmatprep.subr.mxu0 0.0
      %300 = vmatpush1.msra.mxu0 0.0
      %301 = vmatprep.subr.mxu0 0.0
      %302 = vmatpush1.msra.mxu0 0.0
      %303 = vmatprep.subr.mxu0 0.0
      %304 = vmatpush1.msra.mxu0 0.0
      %305 = vmatprep.subr.mxu0 0.0
      %306 = vmatpush1.msra.mxu0 0.0
      %307 = vmatprep.subr.mxu0 0.0
      %308 = vmatpush1.msra.mxu0 0.0
      %309 = vmatprep.subr.mxu0 0.0
      %310 = vmatpush1.msra.mxu0 0.0
      %311 = vmatprep.subr.mxu0 0.0
      %312 = vmatpush1.msra.mxu0 0.0
      %313 = vmatprep.subr.mxu0 0.0
      %314 = vmatpush1.msra.mxu0 0.0
      %315 = vmatprep.subr.mxu0 0.0
      %316 = vmatpush1.msra.mxu0 0.0
      %317 = vmatprep.subr.mxu0 0.0
      %318 = vmatpush1.msra.mxu0 0.0
      %319 = vmatprep.subr.mxu0 0.0
      %320 = vmatpush1.msra.mxu0 0.0
      %321 = vmatprep.subr.mxu0 0.0
      %322 = vmatpush1.msra.mxu0 0.0
      %323 = vmatprep.subr.mxu0 0.0
      %324 = vmatpush1.msra.mxu0 %v291
      %325 = vmatprep.subr.mxu0 0.0
      %326 = vmatpush2.msra.mxu0 0.0
      %327 = vmatprep.subr.mxu0 0.0
      %328 = vmatpush2.msra.mxu0 0.0
      %329 = vmatprep.subr.mxu0 0.0
      %330 = vmatpush2.msra.mxu0 0.0
      %331 = vmatprep.subr.mxu0 0.0
      %332 = vmatpush2.msra.mxu0 0.0
      %333 = vmatprep.subr.mxu0 0.0
      %334 = vmatpush2.msra.mxu0 0.0
      %335 = vmatprep.subr.mxu0 0.0
      %336 = vmatpush2.msra.mxu0 0.0
      %337 = vmatprep.subr.mxu0 0.0
      %338 = vmatpush2.msra.mxu0 0.0
      %339 = vmatprep.subr.mxu0 0.0
      %340 = vmatpush2.msra.mxu0 0.0
      %341 = vmatprep.subr.mxu0 0.0
      %342 = vmatpush2.msra.mxu0 0.0
      %343 = vmatprep.subr.mxu0 0.0
      %344 = vmatpush2.msra.mxu0 0.0
      %345 = vmatprep.subr.mxu0 0.0
      %346 = vmatpush2.msra.mxu0 0.0
      %347 = vmatprep.subr.mxu0 0.0
      %348 = vmatpush2.msra.mxu0 0.0
      %349 = vmatprep.subr.mxu0 0.0
      %350 = vmatpush2.msra.mxu0 0.0
      %351 = vmatprep.subr.mxu0 0.0
      %352 = vmatpush2.msra.mxu0 0.0
      %353 = vmatprep.subr.mxu0 0.0
      %354 = vmatpush2.msra.mxu0 0.0
      %355 = vmatprep.subr.mxu0 0.0
      %356 = vmatpush2.msra.mxu0 0.0
      %357 = vmatprep.mubr.f32.mxu0 0.0
      %358 = vmatmul.mubr.f32.gmra.mxu0 %v284
      %v359 = vpop.f32.mrf.mxu0
      %v360 = vadd.f32 0.0, %v359
      %v361 = vpop.f32.mrf.mxu0
      %362 = vmatprep.mubr.f32.mxu0 0.0
      %363 = vmatmul.mubr.f32.gmra.mxu0 %v287
      %v364 = vpop.f32.mrf.mxu0
      %v365 = vadd.f32 0.0, %v364
      %v366 = vpop.f32.mrf.mxu0
      %367 = vdwg.mxu0
      %v369 = vsel %vm282, %v277, 0
      %v372 = vsel %vm282, %v278, 0
      %v375 = vsel %vm289, %v279, 0
      %377 = vmatprep.subr.mxu0 0.0
      %378 = vmatpush1.msra.mxu0 0.0
      %379 = vmatprep.subr.mxu0 0.0
      %380 = vmatpush1.msra.mxu0 0.0
      %381 = vmatprep.subr.mxu0 0.0
      %382 = vmatpush1.msra.mxu0 0.0
      %383 = vmatprep.subr.mxu0 0.0
      %384 = vmatpush1.msra.mxu0 0.0
      %385 = vmatprep.subr.mxu0 0.0
      %386 = vmatpush1.msra.mxu0 0.0
      %387 = vmatprep.subr.mxu0 0.0
      %388 = vmatpush1.msra.mxu0 0.0
      %389 = vmatprep.subr.mxu0 0.0
      %390 = vmatpush1.msra.mxu0 0.0
      %391 = vmatprep.subr.mxu0 0.0
      %392 = vmatpush1.msra.mxu0 0.0
      %393 = vmatprep.subr.mxu0 0.0
      %394 = vmatpush1.msra.mxu0 0.0
      %395 = vmatprep.subr.mxu0 0.0
      %396 = vmatpush1.msra.mxu0 0.0
      %397 = vmatprep.subr.mxu0 0.0
      %398 = vmatpush1.msra.mxu0 0.0
      %399 = vmatprep.subr.mxu0 0.0
      %400 = vmatpush1.msra.mxu0 0.0
      %401 = vmatprep.subr.mxu0 0.0
      %402 = vmatpush1.msra.mxu0 0.0
      %403 = vmatprep.subr.mxu0 0.0
      %404 = vmatpush1.msra.mxu0 0.0
      %405 = vmatprep.subr.mxu0 0.0
      %406 = vmatpush1.msra.mxu0 0.0
      %407 = vmatprep.subr.mxu0 0.0
      %408 = vmatpush1.msra.mxu0 %v375
      %409 = vmatprep.subr.mxu0 0.0
      %410 = vmatpush2.msra.mxu0 0.0
      %411 = vmatprep.subr.mxu0 0.0
      %412 = vmatpush2.msra.mxu0 0.0
      %413 = vmatprep.subr.mxu0 0.0
      %414 = vmatpush2.msra.mxu0 0.0
      %415 = vmatprep.subr.mxu0 0.0
      %416 = vmatpush2.msra.mxu0 0.0
      %417 = vmatprep.subr.mxu0 0.0
      %418 = vmatpush2.msra.mxu0 0.0
      %419 = vmatprep.subr.mxu0 0.0
      %420 = vmatpush2.msra.mxu0 0.0
      %421 = vmatprep.subr.mxu0 0.0
      %422 = vmatpush2.msra.mxu0 0.0
      %423 = vmatprep.subr.mxu0 0.0
      %424 = vmatpush2.msra.mxu0 0.0
      %425 = vmatprep.subr.mxu0 0.0
      %426 = vmatpush2.msra.mxu0 0.0
      %427 = vmatprep.subr.mxu0 0.0
      %428 = vmatpush2.msra.mxu0 0.0
      %429 = vmatprep.subr.mxu0 0.0
      %430 = vmatpush2.msra.mxu0 0.0
      %431 = vmatprep.subr.mxu0 0.0
      %432 = vmatpush2.msra.mxu0 0.0
      %433 = vmatprep.subr.mxu0 0.0
      %434 = vmatpush2.msra.mxu0 0.0
      %435 = vmatprep.subr.mxu0 0.0
      %436 = vmatpush2.msra.mxu0 0.0
      %437 = vmatprep.subr.mxu0 0.0
      %438 = vmatpush2.msra.mxu0 0.0
      %439 = vmatprep.subr.mxu0 0.0
      %440 = vmatpush2.msra.mxu0 0.0
      %441 = vmatprep.mubr.f32.mxu0 0.0
      %442 = vmatmul.mubr.f32.gmra.mxu0 %v369
      %v443 = vpop.f32.mrf.mxu0
      %v444 = vadd.f32 %v360, %v443
      %v445 = vpop.f32.mrf.mxu0
      %446 = vmatprep.mubr.f32.mxu0 0.0
      %447 = vmatmul.mubr.f32.gmra.mxu0 %v372
      %v448 = vpop.f32.mrf.mxu0
      %v449 = vadd.f32 %v365, %v448
      %v450 = vpop.f32.mrf.mxu0
      %451 = vdwg.mxu0
      %v452 = vrot.slane %v254, 1
      %v453 = vrot.slane %v255, 1
      %vm454 = vcmp.lt.s32.totalorder %v261, 7
      %v455 = vsel %vm454, %v452, %v453
      %v456 = vsel %vm454, %v453, %v452
      %vm457 = vcmp.lt.s32.totalorder %v252, 15
      %vm458 = vcmp.lt.s32.totalorder %v253, 15
      %v459 = vsel %vm457, 1, 0
      %v460 = vsel %vm458, 1, 0
      %461 = vset.pattern.permute.xlu0 0
      %462 = vperm.xlu0 %461, %v459
      %v463 = vpop.permute.xlu0 %462
      %464 = vset.pattern.permute.xlu0 0
      %465 = vperm.xlu0 %464, %v460
      %v466 = vpop.permute.xlu0 %465
      %vm467 = vcmp.eq.s32.totalorder %v463, 1
      %vm468 = vcmp.eq.s32.totalorder %v466, 1
      %v469 = vsel %vm467, %v455, 0.0
      %v470 = vsel %vm468, %v456, 0.0
      %s471 = scalar_lea.vmem %s2, 8
      %v472 = vld [vmem:[%s471] sm:$0xf]
      %v474 = vsel %vm282, %v469, 0
      %v477 = vsel %vm282, %v470, 0
      %v480 = vsel %vm289, %v472, 0
      %482 = vmatprep.subr.mxu0 0.0
      %483 = vmatpush1.msra.mxu0 0.0
      %484 = vmatprep.subr.mxu0 0.0
      %485 = vmatpush1.msra.mxu0 0.0
      %486 = vmatprep.subr.mxu0 0.0
      %487 = vmatpush1.msra.mxu0 0.0
      %488 = vmatprep.subr.mxu0 0.0
      %489 = vmatpush1.msra.mxu0 0.0
      %490 = vmatprep.subr.mxu0 0.0
      %491 = vmatpush1.msra.mxu0 0.0
      %492 = vmatprep.subr.mxu0 0.0
      %493 = vmatpush1.msra.mxu0 0.0
      %494 = vmatprep.subr.mxu0 0.0
      %495 = vmatpush1.msra.mxu0 0.0
      %496 = vmatprep.subr.mxu0 0.0
      %497 = vmatpush1.msra.mxu0 0.0
      %498 = vmatprep.subr.mxu0 0.0
      %499 = vmatpush1.msra.mxu0 0.0
      %500 = vmatprep.subr.mxu0 0.0
      %501 = vmatpush1.msra.mxu0 0.0
      %502 = vmatprep.subr.mxu0 0.0
      %503 = vmatpush1.msra.mxu0 0.0
      %504 = vmatprep.subr.mxu0 0.0
      %505 = vmatpush1.msra.mxu0 0.0
      %506 = vmatprep.subr.mxu0 0.0
      %507 = vmatpush1.msra.mxu0 0.0
      %508 = vmatprep.subr.mxu0 0.0
      %509 = vmatpush1.msra.mxu0 0.0
      %510 = vmatprep.subr.mxu0 0.0
      %511 = vmatpush1.msra.mxu0 0.0
      %512 = vmatprep.subr.mxu0 0.0
      %513 = vmatpush1.msra.mxu0 %v480
      %514 = vmatprep.subr.mxu0 0.0
      %515 = vmatpush2.msra.mxu0 0.0
      %516 = vmatprep.subr.mxu0 0.0
      %517 = vmatpush2.msra.mxu0 0.0
      %518 = vmatprep.subr.mxu0 0.0
      %519 = vmatpush2.msra.mxu0 0.0
      %520 = vmatprep.subr.mxu0 0.0
      %521 = vmatpush2.msra.mxu0 0.0
      %522 = vmatprep.subr.mxu0 0.0
      %523 = vmatpush2.msra.mxu0 0.0
      %524 = vmatprep.subr.mxu0 0.0
      %525 = vmatpush2.msra.mxu0 0.0
      %526 = vmatprep.subr.mxu0 0.0
      %527 = vmatpush2.msra.mxu0 0.0
      %528 = vmatprep.subr.mxu0 0.0
      %529 = vmatpush2.msra.mxu0 0.0
      %530 = vmatprep.subr.mxu0 0.0
      %531 = vmatpush2.msra.mxu0 0.0
      %532 = vmatprep.subr.mxu0 0.0
      %533 = vmatpush2.msra.mxu0 0.0
      %534 = vmatprep.subr.mxu0 0.0
      %535 = vmatpush2.msra.mxu0 0.0
      %536 = vmatprep.subr.mxu0 0.0
      %537 = vmatpush2.msra.mxu0 0.0
      %538 = vmatprep.subr.mxu0 0.0
      %539 = vmatpush2.msra.mxu0 0.0
      %540 = vmatprep.subr.mxu0 0.0
      %541 = vmatpush2.msra.mxu0 0.0
      %542 = vmatprep.subr.mxu0 0.0
      %543 = vmatpush2.msra.mxu0 0.0
      %544 = vmatprep.subr.mxu0 0.0
      %545 = vmatpush2.msra.mxu0 0.0
      %546 = vmatprep.mubr.f32.mxu0 0.0
      %547 = vmatmul.mubr.f32.gmra.mxu0 %v474
      %v548 = vpop.f32.mrf.mxu0
      %v549 = vadd.f32 0.0, %v548
      %v550 = vpop.f32.mrf.mxu0
      %551 = vmatprep.mubr.f32.mxu0 0.0
      %552 = vmatmul.mubr.f32.gmra.mxu0 %v477
      %v553 = vpop.f32.mrf.mxu0
      %v554 = vadd.f32 0.0, %v553
      %v555 = vpop.f32.mrf.mxu0
      %556 = vdwg.mxu0
      %v557 = vadd.f32 %v444, %v549
      %v558 = vadd.f32 %v449, %v554
      %v560 = vlaneseq
      %v561 = vshrl.u32 %v560, 7
      %v562 = vsub.s32 0, %v561
      %v563 = vrot.slane %v256, %v562
      %v565 = vadd.f32 %v557, %v563
      %v566 = vadd.f32 %v558, %v563
      %vm567 = vcmp.ge.f32.partialorder %v565, 0.0
      %vm568 = vcmp.ge.f32.partialorder %v566, 0.0
      %v569 = vmul.f32 %v565, 0.01
      %v570 = vmul.f32 %v566, 0.01
      %v571 = vsel %vm567, %v565, %v569
      %v572 = vsel %vm568, %v566, %v570
      %vm573 = vcmask 130048
      %v574 = vsel %vm573, %v571, 0.0
      %v575 = vsel %vm573, %v572, 0.0
      %v576 = vadd.f32 %v574, %v575
      %v577 = vrot.slane %v576, 4
      %v578 = vadd.f32 %v576, %v577
      %v579 = vrot.slane %v578, 2
      %v580 = vadd.f32 %v578, %v579
      %v581 = vrot.slane %v580, 1
      %v582 = vadd.f32 %v580, %v581
      %v583 = vrcp.pop 16.0
      %v584 = vmul.f32 %v582, %v583
      %v585 = vsub.f32 %v571, %v584
      %v586 = vsub.f32 %v572, %v584
      %v587 = vmul.f32 %v585, %v585
      %v588 = vmul.f32 %v586, %v586
      %v589 = vsel %vm573, %v587, 0.0
      %v590 = vsel %vm573, %v588, 0.0
      %v591 = vadd.f32 %v589, %v590
      %v592 = vrot.slane %v591, 4
      %v593 = vadd.f32 %v591, %v592
      %v594 = vrot.slane %v593, 2
      %v595 = vadd.f32 %v593, %v594
      %v596 = vrot.slane %v595, 1
      %v597 = vadd.f32 %v595, %v596
      %v598 = vmul.f32 %v597, %v583
      %v599 = vadd.f32 %v598, 1e-06
      %v600 = vrsqrt.pop %v599
      %v601 = vmul.f32 %v585, %v600
      %v602 = vmul.f32 %v586, %v600
      %vm603 = vcmp.ge.f32.partialorder %v601, 0.0
      %vm604 = vcmp.ge.f32.partialorder %v602, 0.0
      %v605 = vmul.f32 %v601, 0.01
      %v606 = vmul.f32 %v602, 0.01
      %v607 = vsel %vm603, %v601, %v605
      %v608 = vsel %vm604, %v602, %v606
      %v609 = vxor.u32 %v607, 2147483648
      %v610 = vxor.u32 %v608, 2147483648
      %v611 = vmul.f32 %v609, 1.442695
      %v612 = vpow.pop %v611
      %v613 = vmul.f32 %v610, 1.442695
      %v614 = vpow.pop %v613
      %v615 = vadd.f32 %v612, 1.0
      %v616 = vadd.f32 %v614, 1.0
      %v617 = vrcp.pop %v615
      %v618 = vmul.f32 1.0, %v617
      %v619 = vrcp.pop %v616
      %v620 = vmul.f32 1.0, %v619
      %623 = vrot.lane.b32.xlu0 %v618, 120
      %v624 = vpop.permute.xlu0 %623
      %625 = vrot.lane.b32.xlu0 %v620, 120
      %v626 = vpop.permute.xlu0 %625
      %v629 = vmul.f32 %v607, %v624
      %v630 = vmul.f32 %v608, %v626
      %v631 = vrot.slane %v629, 7
      %v632 = vrot.slane %v630, 7
      %v633 = vsel %vm262, %v631, %v632
      %v634 = vsel %vm262, %v632, %v631
      %v635 = vsel %vm275, %v634, 0.0
      %v636 = vsel %vm276, %v633, 0.0
      %v637 = vld [vmem:[%s4] sm:$0xff]
      %s638 = scalar_lea.vmem %s4, 8
      %v639 = vld [vmem:[%s638] sm:$0xff]
      %vm640 = vcmask 64512
      %v642 = vsel %vm640, %v629, 0
      %v645 = vsel %vm640, %v630, 0
      %647 = vmatprep.subr.mxu0 0.0
      %648 = vmatpush1.msra.mxu0 0.0
      %649 = vmatprep.subr.mxu0 0.0
      %650 = vmatpush1.msra.mxu0 0.0
      %651 = vmatprep.subr.mxu0 0.0
      %652 = vmatpush1.msra.mxu0 0.0
      %653 = vmatprep.subr.mxu0 0.0
      %654 = vmatpush1.msra.mxu0 0.0
      %655 = vmatprep.subr.mxu0 0.0
      %656 = vmatpush1.msra.mxu0 0.0
      %657 = vmatprep.subr.mxu0 0.0
      %658 = vmatpush1.msra.mxu0 0.0
      %659 = vmatprep.subr.mxu0 0.0
      %660 = vmatpush1.msra.mxu0 0.0
      %661 = vmatprep.subr.mxu0 0.0
      %662 = vmatpush1.msra.mxu0 0.0
      %663 = vmatprep.subr.mxu0 0.0
      %664 = vmatpush1.msra.mxu0 0.0
      %665 = vmatprep.subr.mxu0 0.0
      %666 = vmatpush1.msra.mxu0 0.0
      %667 = vmatprep.subr.mxu0 0.0
      %668 = vmatpush1.msra.mxu0 0.0
      %669 = vmatprep.subr.mxu0 0.0
      %670 = vmatpush1.msra.mxu0 0.0
      %671 = vmatprep.subr.mxu0 0.0
      %672 = vmatpush1.msra.mxu0 0.0
      %673 = vmatprep.subr.mxu0 0.0
      %674 = vmatpush1.msra.mxu0 0.0
      %675 = vmatprep.subr.mxu0 0.0
      %676 = vmatpush1.msra.mxu0 0.0
      %677 = vmatprep.subr.mxu0 0.0
      %678 = vmatpush1.msra.mxu0 %v639
      %679 = vmatprep.subr.mxu0 0.0
      %680 = vmatpush2.msra.mxu0 0.0
      %681 = vmatprep.subr.mxu0 0.0
      %682 = vmatpush2.msra.mxu0 0.0
      %683 = vmatprep.subr.mxu0 0.0
      %684 = vmatpush2.msra.mxu0 0.0
      %685 = vmatprep.subr.mxu0 0.0
      %686 = vmatpush2.msra.mxu0 0.0
      %687 = vmatprep.subr.mxu0 0.0
      %688 = vmatpush2.msra.mxu0 0.0
      %689 = vmatprep.subr.mxu0 0.0
      %690 = vmatpush2.msra.mxu0 0.0
      %691 = vmatprep.subr.mxu0 0.0
      %692 = vmatpush2.msra.mxu0 0.0
      %693 = vmatprep.subr.mxu0 0.0
      %694 = vmatpush2.msra.mxu0 0.0
      %695 = vmatprep.subr.mxu0 0.0
      %696 = vmatpush2.msra.mxu0 0.0
      %697 = vmatprep.subr.mxu0 0.0
      %698 = vmatpush2.msra.mxu0 0.0
      %699 = vmatprep.subr.mxu0 0.0
      %700 = vmatpush2.msra.mxu0 0.0
      %701 = vmatprep.subr.mxu0 0.0
      %702 = vmatpush2.msra.mxu0 0.0
      %703 = vmatprep.subr.mxu0 0.0
      %704 = vmatpush2.msra.mxu0 0.0
      %705 = vmatprep.subr.mxu0 0.0
      %706 = vmatpush2.msra.mxu0 0.0
      %707 = vmatprep.subr.mxu0 0.0
      %708 = vmatpush2.msra.mxu0 0.0
      %709 = vmatprep.subr.mxu0 0.0
      %710 = vmatpush2.msra.mxu0 0.0
      %711 = vmatprep.mubr.f32.mxu0 0.0
      %712 = vmatmul.mubr.f32.gmra.mxu0 %v642
      %v713 = vpop.f32.mrf.mxu0
      %v714 = vadd.f32 0.0, %v713
      %v715 = vpop.f32.mrf.mxu0
      %716 = vmatprep.mubr.f32.mxu0 0.0
      %717 = vmatmul.mubr.f32.gmra.mxu0 %v645
      %v718 = vpop.f32.mrf.mxu0
      %v719 = vadd.f32 0.0, %v718
      %v720 = vpop.f32.mrf.mxu0
      %721 = vdwg.mxu0
      %v723 = vsel %vm640, %v635, 0
      %v726 = vsel %vm640, %v636, 0
      %728 = vmatprep.subr.mxu0 0.0
      %729 = vmatpush1.msra.mxu0 0.0
      %730 = vmatprep.subr.mxu0 0.0
      %731 = vmatpush1.msra.mxu0 0.0
      %732 = vmatprep.subr.mxu0 0.0
      %733 = vmatpush1.msra.mxu0 0.0
      %734 = vmatprep.subr.mxu0 0.0
      %735 = vmatpush1.msra.mxu0 0.0
      %736 = vmatprep.subr.mxu0 0.0
      %737 = vmatpush1.msra.mxu0 0.0
      %738 = vmatprep.subr.mxu0 0.0
      %739 = vmatpush1.msra.mxu0 0.0
      %740 = vmatprep.subr.mxu0 0.0
      %741 = vmatpush1.msra.mxu0 0.0
      %742 = vmatprep.subr.mxu0 0.0
      %743 = vmatpush1.msra.mxu0 0.0
      %744 = vmatprep.subr.mxu0 0.0
      %745 = vmatpush1.msra.mxu0 0.0
      %746 = vmatprep.subr.mxu0 0.0
      %747 = vmatpush1.msra.mxu0 0.0
      %748 = vmatprep.subr.mxu0 0.0
      %749 = vmatpush1.msra.mxu0 0.0
      %750 = vmatprep.subr.mxu0 0.0
      %751 = vmatpush1.msra.mxu0 0.0
      %752 = vmatprep.subr.mxu0 0.0
      %753 = vmatpush1.msra.mxu0 0.0
      %754 = vmatprep.subr.mxu0 0.0
      %755 = vmatpush1.msra.mxu0 0.0
      %756 = vmatprep.subr.mxu0 0.0
      %757 = vmatpush1.msra.mxu0 0.0
      %758 = vmatprep.subr.mxu0 0.0
      %759 = vmatpush1.msra.mxu0 %v637
      %760 = vmatprep.subr.mxu0 0.0
      %761 = vmatpush2.msra.mxu0 0.0
      %762 = vmatprep.subr.mxu0 0.0
      %763 = vmatpush2.msra.mxu0 0.0
      %764 = vmatprep.subr.mxu0 0.0
      %765 = vmatpush2.msra.mxu0 0.0
      %766 = vmatprep.subr.mxu0 0.0
      %767 = vmatpush2.msra.mxu0 0.0
      %768 = vmatprep.subr.mxu0 0.0
      %769 = vmatpush2.msra.mxu0 0.0
      %770 = vmatprep.subr.mxu0 0.0
      %771 = vmatpush2.msra.mxu0 0.0
      %772 = vmatprep.subr.mxu0 0.0
      %773 = vmatpush2.msra.mxu0 0.0
      %774 = vmatprep.subr.mxu0 0.0
      %775 = vmatpush2.msra.mxu0 0.0
      %776 = vmatprep.subr.mxu0 0.0
      %777 = vmatpush2.msra.mxu0 0.0
      %778 = vmatprep.subr.mxu0 0.0
      %779 = vmatpush2.msra.mxu0 0.0
      %780 = vmatprep.subr.mxu0 0.0
      %781 = vmatpush2.msra.mxu0 0.0
      %782 = vmatprep.subr.mxu0 0.0
      %783 = vmatpush2.msra.mxu0 0.0
      %784 = vmatprep.subr.mxu0 0.0
      %785 = vmatpush2.msra.mxu0 0.0
      %786 = vmatprep.subr.mxu0 0.0
      %787 = vmatpush2.msra.mxu0 0.0
      %788 = vmatprep.subr.mxu0 0.0
      %789 = vmatpush2.msra.mxu0 0.0
      %790 = vmatprep.subr.mxu0 0.0
      %791 = vmatpush2.msra.mxu0 0.0
      %792 = vmatprep.mubr.f32.mxu0 0.0
      %793 = vmatmul.mubr.f32.gmra.mxu0 %v723
      %v794 = vpop.f32.mrf.mxu0
      %v795 = vadd.f32 %v714, %v794
      %v796 = vpop.f32.mrf.mxu0
      %797 = vmatprep.mubr.f32.mxu0 0.0
      %798 = vmatmul.mubr.f32.gmra.mxu0 %v726
      %v799 = vpop.f32.mrf.mxu0
      %v800 = vadd.f32 %v719, %v799
      %v801 = vpop.f32.mrf.mxu0
      %802 = vdwg.mxu0
      %v803 = vrot.slane %v629, 1
      %v804 = vrot.slane %v630, 1
      %v805 = vsel %vm454, %v803, %v804
      %v806 = vsel %vm454, %v804, %v803
      %v807 = vsel %vm467, %v805, 0.0
      %v808 = vsel %vm468, %v806, 0.0
      %s809 = scalar_lea.vmem %s4, 16
      %v810 = vld [vmem:[%s809] sm:$0xff]
      %v812 = vsel %vm640, %v807, 0
      %v815 = vsel %vm640, %v808, 0
      %817 = vmatprep.subr.mxu0 0.0
      %818 = vmatpush1.msra.mxu0 0.0
      %819 = vmatprep.subr.mxu0 0.0
      %820 = vmatpush1.msra.mxu0 0.0
      %821 = vmatprep.subr.mxu0 0.0
      %822 = vmatpush1.msra.mxu0 0.0
      %823 = vmatprep.subr.mxu0 0.0
      %824 = vmatpush1.msra.mxu0 0.0
      %825 = vmatprep.subr.mxu0 0.0
      %826 = vmatpush1.msra.mxu0 0.0
      %827 = vmatprep.subr.mxu0 0.0
      %828 = vmatpush1.msra.mxu0 0.0
      %829 = vmatprep.subr.mxu0 0.0
      %830 = vmatpush1.msra.mxu0 0.0
      %831 = vmatprep.subr.mxu0 0.0
      %832 = vmatpush1.msra.mxu0 0.0
      %833 = vmatprep.subr.mxu0 0.0
      %834 = vmatpush1.msra.mxu0 0.0
      %835 = vmatprep.subr.mxu0 0.0
      %836 = vmatpush1.msra.mxu0 0.0
      %837 = vmatprep.subr.mxu0 0.0
      %838 = vmatpush1.msra.mxu0 0.0
      %839 = vmatprep.subr.mxu0 0.0
      %840 = vmatpush1.msra.mxu0 0.0
      %841 = vmatprep.subr.mxu0 0.0
      %842 = vmatpush1.msra.mxu0 0.0
      %843 = vmatprep.subr.mxu0 0.0
      %844 = vmatpush1.msra.mxu0 0.0
      %845 = vmatprep.subr.mxu0 0.0
      %846 = vmatpush1.msra.mxu0 0.0
      %847 = vmatprep.subr.mxu0 0.0
      %848 = vmatpush1.msra.mxu0 %v810
      %849 = vmatprep.subr.mxu0 0.0
      %850 = vmatpush2.msra.mxu0 0.0
      %851 = vmatprep.subr.mxu0 0.0
      %852 = vmatpush2.msra.mxu0 0.0
      %853 = vmatprep.subr.mxu0 0.0
      %854 = vmatpush2.msra.mxu0 0.0
      %855 = vmatprep.subr.mxu0 0.0
      %856 = vmatpush2.msra.mxu0 0.0
      %857 = vmatprep.subr.mxu0 0.0
      %858 = vmatpush2.msra.mxu0 0.0
      %859 = vmatprep.subr.mxu0 0.0
      %860 = vmatpush2.msra.mxu0 0.0
      %861 = vmatprep.subr.mxu0 0.0
      %862 = vmatpush2.msra.mxu0 0.0
      %863 = vmatprep.subr.mxu0 0.0
      %864 = vmatpush2.msra.mxu0 0.0
      %865 = vmatprep.subr.mxu0 0.0
      %866 = vmatpush2.msra.mxu0 0.0
      %867 = vmatprep.subr.mxu0 0.0
      %868 = vmatpush2.msra.mxu0 0.0
      %869 = vmatprep.subr.mxu0 0.0
      %870 = vmatpush2.msra.mxu0 0.0
      %871 = vmatprep.subr.mxu0 0.0
      %872 = vmatpush2.msra.mxu0 0.0
      %873 = vmatprep.subr.mxu0 0.0
      %874 = vmatpush2.msra.mxu0 0.0
      %875 = vmatprep.subr.mxu0 0.0
      %876 = vmatpush2.msra.mxu0 0.0
      %877 = vmatprep.subr.mxu0 0.0
      %878 = vmatpush2.msra.mxu0 0.0
      %879 = vmatprep.subr.mxu0 0.0
      %880 = vmatpush2.msra.mxu0 0.0
      %881 = vmatprep.mubr.f32.mxu0 0.0
      %882 = vmatmul.mubr.f32.gmra.mxu0 %v812
      %v883 = vpop.f32.mrf.mxu0
      %v884 = vadd.f32 0.0, %v883
      %v885 = vpop.f32.mrf.mxu0
      %886 = vmatprep.mubr.f32.mxu0 0.0
      %887 = vmatmul.mubr.f32.gmra.mxu0 %v815
      %v888 = vpop.f32.mrf.mxu0
      %v889 = vadd.f32 0.0, %v888
      %v890 = vpop.f32.mrf.mxu0
      %891 = vdwg.mxu0
      %v892 = vadd.f32 %v795, %v884
      %v893 = vadd.f32 %v800, %v889
      %v895 = vlaneseq
      %v896 = vshrl.u32 %v895, 7
      %v897 = vsub.s32 0, %v896
      %v898 = vrot.slane %v257, %v897
      %v900 = vadd.f32 %v892, %v898
      %v901 = vadd.f32 %v893, %v898
      %vm902 = vcmp.ge.f32.partialorder %v900, 0.0
      %vm903 = vcmp.ge.f32.partialorder %v901, 0.0
      %v904 = vmul.f32 %v900, 0.01
      %v905 = vmul.f32 %v901, 0.01
      %v906 = vsel %vm902, %v900, %v904
      %v907 = vsel %vm903, %v901, %v905
      %v908 = vsel %vm282, %v906, 0.0
      %v909 = vsel %vm282, %v907, 0.0
      %v910 = vadd.f32 %v908, %v909
      %v911 = vrot.slane %v910, 4
      %v912 = vadd.f32 %v910, %v911
      %v913 = vrot.slane %v912, 2
      %v914 = vadd.f32 %v912, %v913
      %v915 = vrot.slane %v914, 1
      %v916 = vadd.f32 %v914, %v915
      %v917 = vmul.f32 %v916, %v583
      %v918 = vsub.f32 %v906, %v917
      %v919 = vsub.f32 %v907, %v917
      %v920 = vmul.f32 %v918, %v918
      %v921 = vmul.f32 %v919, %v919
      %v922 = vsel %vm282, %v920, 0.0
      %v923 = vsel %vm282, %v921, 0.0
      %v924 = vadd.f32 %v922, %v923
      %v925 = vrot.slane %v924, 4
      %v926 = vadd.f32 %v924, %v925
      %v927 = vrot.slane %v926, 2
      %v928 = vadd.f32 %v926, %v927
      %v929 = vrot.slane %v928, 1
      %v930 = vadd.f32 %v928, %v929
      %v931 = vmul.f32 %v930, %v583
      %v932 = vadd.f32 %v931, 1e-06
      %v933 = vrsqrt.pop %v932
      %v934 = vmul.f32 %v918, %v933
      %v935 = vmul.f32 %v919, %v933
      %vm936 = vcmp.ge.f32.partialorder %v934, 0.0
      %vm937 = vcmp.ge.f32.partialorder %v935, 0.0
      %v938 = vmul.f32 %v934, 0.01
      %v939 = vmul.f32 %v935, 0.01
      %v940 = vsel %vm936, %v934, %v938
      %v941 = vsel %vm937, %v935, %v939
      %v942 = vadd.f32 %v254, %v940
      %v943 = vadd.f32 %v255, %v941
      %944 = vst.msk [vmem:[%s251] sm:$0xff] %vm282, %v942
      %945 = vst.msk [vmem:[%s251 + $0x8] sm:$0xff] %vm282, %v943
      %p946 = scmp.lt.s32.totalorder %s17, 1
      %s947 = scalar_select %p946, %s17, 1
      %s948 = smul.addr %s947, 2
      %s949 = smul.addr %s948, 8
      %s950 = scalar_lea.vmem %s6, %s949
      // Predicated region
      $region45: #{tpu_custom_call.1} parent=43 // pred_check
        %p951 = pneg %p166
      $region46: #{tpu_custom_call.1} parent=43 // pred_check_branch
        %953 = sbr.rel (%p951) target = $region48
      $region47: #{tpu_custom_call.1} parent=43 // pred_region
        _
      $region48: #{tpu_custom_call.1} parent=43 // pred_fallthru
        _
    $region44: #{tpu_custom_call.1} parent=5 // pred_fallthru
      _
    %p954 = scmp.le.s32.totalorder 2, %s12
    // Predicated region
    $region49: #{tpu_custom_call.1} parent=5 // pred_check
      %p955 = pneg %p954
    $region50: #{tpu_custom_call.1} parent=5 // pred_check_branch
      %957 = sbr.rel (%p955) target = $region52
    $region51: #{tpu_custom_call.1} parent=5 // pred_region
      %s958 = ssub.s32 %s12, 2
      // Predicated region
      $region53: #{tpu_custom_call.1} parent=51 // pred_check
        %p959 = pneg %p172
      $region54: #{tpu_custom_call.1} parent=51 // pred_check_branch
        %961 = sbr.rel (%p959) target = $region56
      $region55: #{tpu_custom_call.1} parent=51 // pred_region
        %p962 = scmp.lt.s32.totalorder %s18, 1
        %s963 = scalar_select %p962, %s18, 1
        %s964 = smul.addr %s963, 2
        %s965 = smul.addr %s964, 8
        %s966 = scalar_lea.vmem %s6, %s965
      $region56: #{tpu_custom_call.1} parent=51 // pred_fallthru
        _
    $region52: #{tpu_custom_call.1} parent=5 // pred_fallthru
      _
  $region6: #{tpu_custom_call.1} parent=0 // loop_footer
    %s16 = sadd.s32 1, %s12
  $region7: #{tpu_custom_call.1} parent=0 // loop_footer_branch
    %11 = sbr.rel target = $region3
  $region8: #{tpu_custom_call.1} parent=0 // loop_exit
    _

</llo_original>
